<compile_context>
chip_gen: v7x
topology: tpu7x:2x2x1
jax: 0.10.0
libtpu: 0.0.40
codegen_flags: <defaults>
</compile_context>

<pallas_src>
import jax
import jax.numpy as jnp
from jax.experimental import pallas as pl
from jax.experimental.pallas import tpu as pltpu


def _round_up(x, m):
    return (x + m - 1) // m * m


def _make_collate_kernel(scale_vals, bias_vals):
    """Kernel factory: folds compile-time (1/255, mean, std) into per-channel scale/bias."""
    num_ch = len(scale_vals)

    def kernel(img_ref, out_ref):
        # The channel of this grid step is a scalar -> per-channel scale/bias are scalar
        # constants picked with a tiny scalar where-chain (no full-tile iota / selects /
        # broadcast tensors, so zero extra vreg or VMEM pressure).
        c = pl.program_id(1)
        scale = jnp.float32(scale_vals[0])
        bias = jnp.float32(bias_vals[0])
        for i in range(1, num_ch):
            scale = jnp.where(c == i, jnp.float32(scale_vals[i]), scale)
            bias = jnp.where(c == i, jnp.float32(bias_vals[i]), bias)

        # uint8 -> f32 cast happens in VMEM (no f32 image copy in HBM). The int32 hop is
        # kept deliberately: direct u8->f32 uitofp lowering is uneven across Mosaic
        # generations, and the extra VPU pass is free filler in this HBM-bound kernel
        # (the intermediate is per-block transient, so vreg pressure stays low).
        x = img_ref[...].astype(jnp.int32).astype(jnp.float32)

        # (x/255 - mean)/std  ==  x * (1/(255*std)) + (-mean/std), folded at trace time.
        out_ref[...] = (x * scale + bias).astype(out_ref.dtype)

    return kernel


def _choose_tiles(B, R, out_itemsize, budget_bytes):
    """Pick (bt images, rt 128-lane rows) per grid step under a double-buffered VMEM budget."""

    def footprint(bt, rt):
        in_b = bt * _round_up(rt, 32) * 128                   # uint8 block, (32,128) VMEM tiles
        out_b = bt * _round_up(rt, 8) * 128 * out_itemsize    # f32/bf16 block, (8,128) tiles
        return 2 * (in_b + out_b)                             # x2: Pallas double-buffers in & out

    # Rows per step: a whole channel plane if it fits, else the largest multiple of 32
    # (HW-axis tiling, so a single large image can never exceed the VMEM budget).
    rt = R
    if footprint(1, rt) > budget_bytes:
        rt = 32
        while footprint(1, rt + 32) <= budget_bytes:
            rt += 32

    # Images per step: grow while the footprint fits, but keep >= 2 batch steps when
    # B >= 2 so the parallel grid always exposes work to both of v7x's TensorCores and
    # leaves room for DMA/compute pipelining.
    bt_cap = B if B < 2 else -(-B // 2)
    bt = 1
    while bt < bt_cap and footprint(bt + 1, rt) <= budget_bytes:
        bt += 1
    return bt, rt


def collate_forward(images_hwc_u8, labels, raw_attn, mean, std,
                    out_dtype=jnp.float32,
                    vmem_budget_bytes=16 * 1024 * 1024,
                    vmem_limit_bytes=32 * 1024 * 1024):
    """Pallas implementation of CollateFunction.forward (deterministic path).

    images_hwc_u8: (B, H, W, C) uint8  (PIL-like batch of images)
    labels:        (B,)                any numeric dtype
    raw_attn:      (B, A)              any numeric dtype
    mean, std:     length-C sequences of floats (normalization constants)
    out_dtype:     float32 (reference semantics) or bfloat16 (halves write traffic)
    Returns (transforms, labels, rawAttn) mirroring the torch module.
    """
    B, H, W, C = images_hwc_u8.shape
    HW = H * W
    if HW % 128 != 0:
        # TODO(synk): lane-ragged spatial sizes need per-lane channel masks; the module's
        # pipeline always resizes to 224x224 (50176 = 392*128), so only 128-divisible
        # planes are supported here.
        raise ValueError(f"H*W={HW} must be a multiple of 128")
    R = HW // 128  # 128-lane rows per channel plane

    # ToTensor's HWC->CHW permute, done once in uint8 (1 B/px read + 1 B/px write).
    # TODO(synk): fusing this stride-3 byte de-interleave into the kernel (to drop ~2 of
    # the ~7 HBM bytes/pixel) needs a cross-lane gather / 3-wide minor-dim transpose that
    # Mosaic does not lower robustly; a channel-strided DMA gather costs the same extra
    # traffic, so the cheap u8 permute stays outside the kernel.
    imgs = jnp.transpose(images_hwc_u8, (0, 3, 1, 2)).reshape(B, C, R, 128)

    mean = [float(m) for m in mean]
    std = [float(s) for s in std]
    scale_vals = tuple(1.0 / (255.0 * s) for s in std)
    bias_vals = tuple(-m / s for m, s in zip(mean, std))

    out_itemsize = jnp.dtype(out_dtype).itemsize
    bt, rt = _choose_tiles(B, R, out_itemsize, vmem_budget_bytes)
    grid = (pl.cdiv(B, bt), C, pl.cdiv(R, rt))  # batch x channel x HW-rows, all independent

    kernel = _make_collate_kernel(scale_vals, bias_vals)
    out4 = pl.pallas_call(
        kernel,
        out_shape=jax.ShapeDtypeStruct((B, C, R, 128), out_dtype),
        grid_spec=pltpu.PrefetchScalarGridSpec(
            num_scalar_prefetch=0,
            grid=grid,
            in_specs=[pl.BlockSpec((bt, 1, rt, 128), lambda b, c, r: (b, c, r, 0))],
            out_specs=pl.BlockSpec((bt, 1, rt, 128), lambda b, c, r: (b, c, r, 0)),
        ),
        compiler_params=pltpu.CompilerParams(
            # Purely elementwise: every grid step is independent -> shard across v7x's
            # two TensorCores and let the runtime pipeline DMA against compute.
            dimension_semantics=("parallel", "parallel", "parallel"),
            vmem_limit_bytes=vmem_limit_bytes,
        ),
    )(imgs)

    transforms = out4.reshape(B, C, H, W)

    # Glue: labels / rawAttn are plain float32 casts in the reference module.
    # (Exact only for |label| < 2^24 -- fine for class-id labels.)
    labels_f = jnp.asarray(labels).astype(jnp.float32)
    raw_attn_f = jnp.asarray(raw_attn).astype(jnp.float32)
    return transforms, labels_f, raw_attn_f


if __name__ == "__main__":
    key = jax.random.PRNGKey(0)
    k_img, k_lab, k_attn = jax.random.split(key, 3)

    # Small shapes consistent with the module: batch=2, 3-channel 16x16 images,
    # rawAttn vectors of length 8.
    B, H, W, C, A = 2, 16, 16, 3, 8
    images = jax.random.randint(k_img, (B, H, W, C), 0, 256, dtype=jnp.int32).astype(jnp.uint8)
    labels = jax.random.randint(k_lab, (B,), 0, 10, dtype=jnp.int32)
    raw_attn = jax.random.uniform(k_attn, (B, A), dtype=jnp.float32)

    # imagenet_normalize (argparse.colorize == False path in __init__)
    mean = [0.485, 0.456, 0.406]
    std = [0.229, 0.224, 0.225]

    transforms, labels_f, raw_attn_f = collate_forward(images, labels, raw_attn, mean, std)
    jax.block_until_ready((transforms, labels_f, raw_attn_f))

    # Reference check (plain JAX) for the deterministic ToTensor + Normalize path.
    mean_a = jnp.asarray(mean, jnp.float32).reshape(1, C, 1, 1)
    std_a = jnp.asarray(std, jnp.float32).reshape(1, C, 1, 1)
    ref = (jnp.transpose(images, (0, 3, 1, 2)).astype(jnp.float32) / 255.0 - mean_a) / std_a
    assert transforms.shape == (B, C, H, W) and transforms.dtype == jnp.float32
    assert labels_f.dtype == jnp.float32 and raw_attn_f.dtype == jnp.float32
    assert jnp.allclose(transforms, ref, atol=1e-5)

    print("KERNEL_OK")
</pallas_src>

<mosaic_0001>
module attributes {stable_mosaic.version = 11 : i64} {
  func.func @kernel(%arg0: i32, %arg1: i32, %arg2: i32, %arg3: memref<1x1x2x128xi8, #tpu.memory_space<vmem>>, %arg4: memref<1x1x2x128xf32, #tpu.memory_space<vmem>>) attributes {dimension_semantics = [#tpu.dimension_semantics<parallel>, #tpu.dimension_semantics<parallel>, #tpu.dimension_semantics<parallel>], iteration_bounds = array<i64: 2, 3, 1>, scalar_prefetch = 0 : i64, scratch_operands = 0 : i64, tpu.core_type = #tpu.core_type<tc>, window_params = [{transform_indices = @transform_0, window_bounds = array<i64: 1, 1, 2, 128>}, {transform_indices = @transform_1, window_bounds = array<i64: 1, 1, 2, 128>}]} {
    %c1_i32 = arith.constant 1 : i32
    %0 = arith.cmpi eq, %arg1, %c1_i32 : i32
    %cst = arith.constant 0.0175070036 : f32
    %cst_0 = arith.constant 0.0171247534 : f32
    %1 = arith.select %0, %cst, %cst_0 : f32
    %c1_i32_1 = arith.constant 1 : i32
    %2 = arith.cmpi eq, %arg1, %c1_i32_1 : i32
    %cst_2 = arith.constant -2.03571439 : f32
    %cst_3 = arith.constant -2.11790395 : f32
    %3 = arith.select %2, %cst_2, %cst_3 : f32
    %c2_i32 = arith.constant 2 : i32
    %4 = arith.cmpi eq, %arg1, %c2_i32 : i32
    %cst_4 = arith.constant 0.0174291935 : f32
    %5 = arith.select %4, %cst_4, %1 : f32
    %c2_i32_5 = arith.constant 2 : i32
    %6 = arith.cmpi eq, %arg1, %c2_i32_5 : i32
    %cst_6 = arith.constant -1.80444443 : f32
    %7 = arith.select %6, %cst_6, %3 : f32
    %c0 = arith.constant 0 : index
    %c0_7 = arith.constant 0 : index
    %c0_8 = arith.constant 0 : index
    %c0_9 = arith.constant 0 : index
    %8 = vector.load %arg3[%c0, %c0_7, %c0_8, %c0_9] : memref<1x1x2x128xi8, #tpu.memory_space<vmem>>, vector<1x1x2x128xi8>
    %9 = arith.extui %8 : vector<1x1x2x128xi8> to vector<1x1x2x128xi32>
    %10 = arith.sitofp %9 : vector<1x1x2x128xi32> to vector<1x1x2x128xf32>
    %11 = vector.broadcast %5 : f32 to vector<1x1x2x128xf32>
    %12 = arith.mulf %10, %11 : vector<1x1x2x128xf32>
    %13 = vector.broadcast %7 : f32 to vector<1x1x2x128xf32>
    %14 = arith.addf %12, %13 : vector<1x1x2x128xf32>
    %c0_10 = arith.constant 0 : index
    %c0_11 = arith.constant 0 : index
    %c0_12 = arith.constant 0 : index
    %c0_13 = arith.constant 0 : index
    %15 = vector.load %arg4[%c0_10, %c0_11, %c0_12, %c0_13] : memref<1x1x2x128xf32, #tpu.memory_space<vmem>>, vector<1x1x2x128xf32>
    tpu.vector_store %arg4[%c0_10, %c0_11, %c0_12, %c0_13], %14 {strides = array<i32>} : memref<1x1x2x128xf32, #tpu.memory_space<vmem>>, vector<1x1x2x128xf32>,
    return
  }
  func.func @transform_0(%arg0: i32, %arg1: i32, %arg2: i32) -> (i32, i32, i32, i32) {
    %c0_i32 = arith.constant 0 : i32
    %c0_i32_0 = arith.constant 0 : i32
    return %arg0, %arg1, %arg2, %c0_i32 : i32, i32, i32, i32
  }
  func.func @transform_1(%arg0: i32, %arg1: i32, %arg2: i32) -> (i32, i32, i32, i32) {
    %c0_i32 = arith.constant 0 : i32
    %c0_i32_0 = arith.constant 0 : i32
    return %arg0, %arg1, %arg2, %c0_i32 : i32, i32, i32, i32
  }
}

</mosaic_0001>

<llo_original>
// kernel: tpu_custom_call.1
$region0: #{tpu_custom_call.1}
  #allocation0 [shape = 'u32[]', space=smem, size = 0x4, offset = 0x4, fixed_abs, tag = 'smem constant byte address 0x4 - core index']
  #allocation1 [shape = 'u32[144,128]{1,0:T(1,128)}', space=vmem, size = 0x12000, scoped, tag = 'internal scratch']
  %s0 = inlined_call_operand.vmem [shape: u8[2,3,2,128], index: 0, kind: input, shape index: {}]
  %s1 = inlined_call_operand.hbm [shape: f32[2,3,2,128], index: 1, kind: output, shape index: {}]
  %s2 = sld [smem:[#allocation0]]
  $region37: #{tpu_custom_call.1} parent=0
    _
  %s4 = ssub.s32 1, %s2
  %s5 = scalar_select 0, %s4, %s2
  $region1: #{tpu_custom_call.1} parent=0
    #allocation2 [shape = 'u8[2048]{0}', space=vmem, size = 0x800, scoped, tag = 'output window, operand 0']
    #allocation3 [shape = 's32[2]{0}', space=sflag, size = 0x8, scoped, tag = 'scoped memory for tpu_custom_call.1']
    %6 = vsyncpa [#allocation3], 0
    %s7 = scalar_lea.sflag [#allocation3], 1
    %8 = vsyncpa %s7, 0
    loop: start=0, step=1, limit=8
    $region2: #{tpu_custom_call.1} parent=1 // loop_pre_header
      _
    $region3: #{tpu_custom_call.1} parent=1 // loop_header
      %s10 = sphi 0, %s14
      %p11 = scmp.ge.s32.totalorder %s10, 8
      %s17 = sphi 0, %s36
      %s18 = sphi 0, %s32
      %s19 = sphi 0, %s28
      %s20 = sphi 0, %s17
      %s21 = sphi 0, %s18
      %s22 = sphi 0, %s19
      %s23 = sphi 0, %s20
      %s24 = sphi 0, %s21
      %s25 = sphi 0, %s22
      %s43 = sphi 0, %s45
      %s46 = sphi 0, %s43
      %s47 = sphi 0, %s46
      %s63 = sphi 0, %s47
      %s73 = sphi 0, %s75
      %s76 = sphi 0, %s73
      %s77 = sphi 0, %s76
      %s93 = sphi 0, %s77
    $region4: #{tpu_custom_call.1} parent=1 // loop_header_branch
      %13 = sbr.rel (%p11) target = $region8
    $region5: #{tpu_custom_call.1} parent=1 // loop_body
      %s15 = ssub.s32 %s10, 1
      %s16 = ssub.s32 %s10, 2
      %s26 = sadd.s32 1, %s19
      %p27 = scmp.ge.s32.totalorder %s26, 1
      %s28 = scalar_select %p27, 0, %s26
      %s29 = sadd.s32 1, %s18
      %s30 = scalar_select %p27, %s29, %s18
      %p31 = scmp.ge.s32.totalorder %s30, 3
      %s32 = scalar_select %p31, 0, %s30
      %s33 = sadd.s32 1, %s17
      %s34 = scalar_select %p31, %s33, %s17
      %p35 = scmp.ge.s32.totalorder %s34, 2
      %s36 = scalar_select %p35, 0, %s34
      %s37 = ssub.s32 %s17, %s36
      %s38 = ssub.s32 %s18, %s32
      %s39 = sor.u32 %s37, %s38
      %s40 = ssub.s32 %s19, %s28
      %s41 = sor.u32 %s39, %s40
      %p42 = scmp.eq.s32.totalorder %s41, 0
      %s44 = sadd.s32 %s43, 1
      %s45 = scalar_select %p42, %s43, %s44
      %p48 = pneg %p42
      %p49 = scmp.eq.s32.totalorder %s10, 5
      %p50 = por %p48, %p49
      %p51 = scmp.ne.s32.totalorder %s43, %s46
      %p52 = scmp.eq.s32.totalorder %s10, 0
      %p53 = por %p51, %p52
      %p54 = scmp.ne.s32.totalorder %s43, %s46
      %p55 = scmp.eq.s32.totalorder %s15, 5
      %p56 = por %p54, %p55
      %p57 = scmp.ne.s32.totalorder %s46, %s47
      %p58 = scmp.eq.s32.totalorder %s15, 0
      %p59 = por %p57, %p58
      %p60 = scmp.ne.s32.totalorder %s46, %s47
      %p61 = scmp.eq.s32.totalorder %s16, 5
      %p62 = por %p60, %p61
      %p64 = scmp.ne.s32.totalorder %s47, %s63
      %p65 = scmp.eq.s32.totalorder %s16, 0
      %p66 = por %p64, %p65
      %s67 = ssub.s32 %s17, %s36
      %s68 = ssub.s32 %s18, %s32
      %s69 = sor.u32 %s67, %s68
      %s70 = ssub.s32 %s19, %s28
      %s71 = sor.u32 %s69, %s70
      %p72 = scmp.eq.s32.totalorder %s71, 0
      %s74 = sadd.s32 %s73, 1
      %s75 = scalar_select %p72, %s73, %s74
      %p78 = pneg %p72
      %p79 = scmp.eq.s32.totalorder %s10, 5
      %p80 = por %p78, %p79
      %p81 = scmp.ne.s32.totalorder %s73, %s76
      %p82 = scmp.eq.s32.totalorder %s10, 0
      %p83 = por %p81, %p82
      %p84 = scmp.ne.s32.totalorder %s73, %s76
      %p85 = scmp.eq.s32.totalorder %s15, 5
      %p86 = por %p84, %p85
      %p87 = scmp.ne.s32.totalorder %s76, %s77
      %p88 = scmp.eq.s32.totalorder %s15, 0
      %p89 = por %p87, %p88
      %p90 = scmp.ne.s32.totalorder %s76, %s77
      %p91 = scmp.eq.s32.totalorder %s16, 5
      %p92 = por %p90, %p91
      %p94 = scmp.ne.s32.totalorder %s77, %s93
      %p95 = scmp.eq.s32.totalorder %s16, 0
      %p96 = por %p94, %p95
      %p97 = scmp.le.s32.totalorder 1, %s10
      %p98 = scmp.lt.s32.totalorder %s10, 7
      %p99 = pnand %p97, %p98
      %p100 = pneg %p99
      // Predicated region
      $region9: #{tpu_custom_call.1} parent=5 // pred_check
        _
      $region10: #{tpu_custom_call.1} parent=5 // pred_check_branch
        %102 = sbr.rel (%p99) target = $region12
      $region11: #{tpu_custom_call.1} parent=5 // pred_region
        %s103 = ssub.s32 %s10, 1
      $region12: #{tpu_custom_call.1} parent=5 // pred_fallthru
        _
      %p104 = scmp.lt.s32.totalorder %s10, 6
      // Predicated region
      $region13: #{tpu_custom_call.1} parent=5 // pred_check
        %p105 = pneg %p104
      $region14: #{tpu_custom_call.1} parent=5 // pred_check_branch
        %107 = sbr.rel (%p105) target = $region16
      $region15: #{tpu_custom_call.1} parent=5 // pred_region
        // Predicated region
        $region17: #{tpu_custom_call.1} parent=15 // pred_check
          %p108 = pneg %p53
        $region18: #{tpu_custom_call.1} parent=15 // pred_check_branch
          %110 = sbr.rel (%p108) target = $region20
        $region19: #{tpu_custom_call.1} parent=15 // pred_region
          %p111 = scmp.lt.s32.totalorder %s17, 1
          %s112 = scalar_select %p111, %s17, 1
          %p113 = scmp.lt.s32.totalorder %s18, 2
          %s114 = scalar_select %p113, %s18, 2
          %p115 = scmp.lt.s32.totalorder %s19, 0
          %s116 = scalar_select %p115, %s19, 0
          %s117 = sadd.s32 %s116, %s114
          %s118 = smul.addr %s112, 3
          %s119 = sadd.s32 %s117, %s118
          %s120 = scalar_lea.vmem %s0, %s119
        $region20: #{tpu_custom_call.1} parent=15 // pred_fallthru
          _
      $region16: #{tpu_custom_call.1} parent=5 // pred_fallthru
        _
      %p121 = scmp.le.s32.totalorder 1, %s10
      %p122 = scmp.lt.s32.totalorder %s10, 7
      %p123 = pnand %p121, %p122
      %p124 = pneg %p123
      // Predicated region
      $region21: #{tpu_custom_call.1} parent=5 // pred_check
        _
      $region22: #{tpu_custom_call.1} parent=5 // pred_check_branch
        %126 = sbr.rel (%p123) target = $region24
      $region23: #{tpu_custom_call.1} parent=5 // pred_region
        %s127 = ssub.s32 %s10, 1
        %p128 = scmp.lt.s32.totalorder %s20, 1
        %s129 = scalar_select %p128, %s20, 1
        %p130 = scmp.lt.s32.totalorder %s21, 2
        %s131 = scalar_select %p130, %s21, 2
        %p132 = scmp.lt.s32.totalorder %s22, 0
        %s133 = scalar_select %p132, %s22, 0
        %s134 = sadd.s32 %s133, %s131
        %s135 = smul.addr %s129, 3
        %s136 = sadd.s32 %s134, %s135
        %s137 = scalar_lea.vmem %s0, %s136
        %p138 = pneg %p59
        %p139 = pneg %p56
        %p140 = pneg %p89
        %p141 = pneg %p86
        %s142 = sand.u32 %s76, 1
        %s143 = scalar_lea.sflag [#allocation3], %s142
        %s144 = sand.u32 %s76, 1
        %s145 = smul.addr %s144, 2
        %s146 = scalar_lea.vmem [#allocation2], %s145
        %p147 = scmp.lt.s32.totalorder %s20, 1
        %s148 = scalar_select %p147, %s20, 1
        %p149 = scmp.lt.s32.totalorder %s21, 2
        %s150 = scalar_select %p149, %s21, 2
        %p151 = scmp.lt.s32.totalorder %s22, 0
        %s152 = scalar_select %p151, %s22, 0
        %s153 = sadd.s32 %s152, %s150
        %s154 = smul.addr %s148, 3
        %s155 = sadd.s32 %s153, %s154
        %s156 = scalar_lea.vmem %s0, %s155
        %p157 = scmp.eq.s32.totalorder %s21, 1
        %s158 = scalar_select %p157, 0.017507004, 0.017124753
        %s159 = scalar_select %p157, -2.0357144, -2.117904
        %p160 = scmp.eq.s32.totalorder %s21, 2
        %s161 = scalar_select %p160, 0.017429193, %s158
        %s162 = scalar_select %p160, -1.8044444, %s159
        %v163 = vld [vmem:[%s156] sm:$0x1]
        %v164 = vunpack.c.0.s8 %v163
        %v165 = vand.u32 %v164, 255
        %v166 = vcvt.s32.f32 %v165
        %v167 = vstv %s161
        %v168 = vmul.f32 %v166, %v167
        %v169 = vstv %s162
        %v170 = vadd.f32 %v168, %v169
        %171 = vst [vmem:[%s146] sm:$0x3] %v170
        %s172 = sand.u32 %s76, 1
        %s173 = scalar_lea.sflag [#allocation3], %s172
        %s174 = sand.u32 %s76, 1
        %s175 = smul.addr %s174, 2
        %s176 = scalar_lea.vmem [#allocation2], %s175
        // Predicated region
        $region25: #{tpu_custom_call.1} parent=23 // pred_check
          %p177 = pneg %p86
        $region26: #{tpu_custom_call.1} parent=23 // pred_check_branch
          %179 = sbr.rel (%p177) target = $region28
        $region27: #{tpu_custom_call.1} parent=23 // pred_region
          %s181 = ssub.s32 32, 32
          %182 = vsyncadd %s173, %s181
          %s183 = sadd.s32 %s22, %s21
          %s184 = smul.addr %s20, 3
          %s185 = sadd.s32 %s183, %s184
          %s186 = smul.addr %s185, 32
          %s187 = scalar_lea.hbm %s1, %s186
          %s189 = sshll.u32 %s176, 4
          %s190 = int_to_ptr.vmem [resolvable:$true] %s189
          %192 = dma.vmem_to_hbm [thread:$0]  %s190, 32, %s187, %s173
        $region28: #{tpu_custom_call.1} parent=23 // pred_fallthru
          _
      $region24: #{tpu_custom_call.1} parent=5 // pred_fallthru
        _
      %p193 = scmp.le.s32.totalorder 2, %s10
      // Predicated region
      $region29: #{tpu_custom_call.1} parent=5 // pred_check
        %p194 = pneg %p193
      $region30: #{tpu_custom_call.1} parent=5 // pred_check_branch
        %196 = sbr.rel (%p194) target = $region32
      $region31: #{tpu_custom_call.1} parent=5 // pred_region
        %s197 = ssub.s32 %s10, 2
        // Predicated region
        $region33: #{tpu_custom_call.1} parent=31 // pred_check
          %p198 = pneg %p92
        $region34: #{tpu_custom_call.1} parent=31 // pred_check_branch
          %200 = sbr.rel (%p198) target = $region36
        $region35: #{tpu_custom_call.1} parent=31 // pred_region
          %s201 = sand.u32 %s77, 1
          %s202 = scalar_lea.sflag [#allocation3], %s201
          %s203 = sand.u32 %s77, 1
          %s204 = smul.addr %s203, 2
          %s205 = scalar_lea.vmem [#allocation2], %s204
          %206 = dma.done %s202, 32
        $region36: #{tpu_custom_call.1} parent=31 // pred_fallthru
          _
      $region32: #{tpu_custom_call.1} parent=5 // pred_fallthru
        _
    $region6: #{tpu_custom_call.1} parent=1 // loop_footer
      %s14 = sadd.s32 1, %s10
    $region7: #{tpu_custom_call.1} parent=1 // loop_footer_branch
      %9 = sbr.rel target = $region3
    $region8: #{tpu_custom_call.1} parent=1 // loop_exit
      _
    %207 = vsyncpa [#allocation3], 1
    %s208 = scalar_lea.sflag [#allocation3], 1
    %209 = vsyncpa %s208, 1

</llo_original>
